<compile_context>
chip_gen: v7x
topology: tpu7x:2x2x1
jax: 0.10.0
libtpu: 0.0.40
codegen_flags: <defaults>
</compile_context>

<pallas_src>
import math

import jax
import jax.numpy as jnp
from jax.experimental import pallas as pl
from jax.experimental.pallas import tpu as pltpu

RATIO = 0.99
_NEG = -1e30  # finite "minus infinity": fully-masked rows stay NaN-free


# ----------------------------------------------------------------------------
# VMEM budgeting / tile selection
# ----------------------------------------------------------------------------
def _vmem_budget_bytes():
    """Per-generation scoped-VMEM budget (leave ~25% headroom).

    v7x: 64 MiB physical -> ~48 MiB budget;  v5e/v6e: 128 MiB -> ~96 MiB.
    """
    try:
        cap = int(pltpu.get_tpu_info().vmem_capacity_bytes)
    except Exception:
        cap = 64 * 1024 * 1024
    return min(int(cap * 0.75), 100 * 1024 * 1024)


def _pick_batch_tile(B, L, E, itemsize, tile_budget_bytes, min_steps=4):
    """Largest batch tile that (a) fits the double-buffered VMEM budget,
    (b) keeps >= min_steps grid steps when possible, (c) divides B exactly."""
    per_row = 2 * (L * E + E) * itemsize + 2 * (L + E + 1) * 4  # in+out, 2-deep
    max_tb = max(1, tile_budget_bytes // max(per_row, 1))
    max_tb = min(max_tb, max(1, B // min_steps))   # pipelining + v7x 2-TC sharding
    max_tb = min(max_tb, B)
    for d in range(int(max_tb), 0, -1):            # largest divisor of B
        if B % d == 0:
            return d
    return 1


def _pick_vocab_tile(V, D, itemsize, tile_budget_bytes):
    if V % 128 != 0:
        # TODO(synk): partial-last-tile path for huge vocabs not a multiple of 128.
        return V
    max_tv = max(128, min(2048, (tile_budget_bytes // (2 * D * itemsize)) // 128 * 128))
    tv = min(V, max_tv)
    while V % tv != 0:
        tv -= 128
    return tv


# ----------------------------------------------------------------------------
# Fused additive attention: scores = softmax(mask(q . enc)),  ctx = scores @ enc
# ----------------------------------------------------------------------------
def _attention_kernel(q_ref, enc_ref, len_ref, scores_ref, ctx_ref):
    q = q_ref[...]        # (TB, 1, E)  enc dtype (f32 or bf16)
    enc = enc_ref[...]    # (TB, L, E)  enc dtype

    # att[b, 0, l] = sum_e q[b, 0, e] * enc[b, l, e]   (batched matvec, MXU)
    att = jnp.einsum("bqe,ble->bql", q, enc,
                     preferred_element_type=jnp.float32)       # (TB, 1, L) f32

    # mask out-of-length positions with a large finite negative (length==0 rows
    # then give a finite uniform softmax instead of NaN).
    pos = jax.lax.broadcasted_iota(jnp.int32, att.shape, 2)
    att = jnp.where(pos < len_ref[...], att, _NEG)

    # numerically stable softmax over L; divide -> EUP reciprocal
    att = att - jnp.max(att, axis=2, keepdims=True)
    e = jnp.exp(att)
    denom = jnp.sum(e, axis=2, keepdims=True)
    probs = e * pl.reciprocal(denom, approx=True)               # (TB, 1, L) f32
    scores_ref[...] = probs.astype(scores_ref.dtype)

    # fused weighted sum (the bmm in MultiDecoder); probs stay f32 on the f32
    # path, are cast to bf16 only when enc itself is stored in bf16.
    ctx = jnp.einsum("bql,ble->bqe", probs.astype(enc.dtype), enc,
                     preferred_element_type=jnp.float32)        # (TB, 1, E) f32
    ctx_ref[...] = ctx.astype(ctx_ref.dtype)


def additive_attention(hidden, enc_output, obj_emb, weight, length=None, *,
                       vmem_budget_bytes=None):
    """Pallas additive attention.

    hidden:     (B, D) f32
    enc_output: (B, L, E) f32 or bf16 (bf16 halves HBM/VMEM traffic; pass it
                already in bf16 -- no pre-cast pass is done here)
    obj_emb:    (B, 1, D) f32
    weight:     (D, E)    nn.Linear(enc_hid, dec_hid, bias=False).weight
    length:     (B,) int or None
    Returns (scores (B, L) f32, context (B, E) f32).
    """
    B, L, E = enc_output.shape
    D = weight.shape[0]
    budget = vmem_budget_bytes if vmem_budget_bytes is not None else _vmem_budget_bytes()

    # --- exact algebraic rewrite, hoisted out of the kernel -------------------
    # att = ((0.99*hidden + 0.01*obj) @ W) . enc  -- never materializes [B,L,D].
    obj = obj_emb.reshape(B, D)
    combined = RATIO * hidden + (1.0 - RATIO) * obj                  # (B, D)
    q = jnp.dot(combined, weight)                                    # (B, E), default precision
    q = q.astype(enc_output.dtype)[:, None, :]                       # (B, 1, E)

    if length is None:
        length = jnp.full((B,), L, dtype=jnp.int32)
    len3 = length.astype(jnp.int32).reshape(B, 1, 1)

    itemsize = jnp.dtype(enc_output.dtype).itemsize
    # TB from the VMEM budget; ~60% of the scoped limit is reserved for the
    # pipelined blocks, the rest for in-kernel temporaries.
    TB = _pick_batch_tile(B, L, E, itemsize, int(budget * 0.6))
    # TODO(synk): for very large L*E where even TB=1 exceeds the budget, add an
    # L-tiled flash-style (running max / denom / ctx accumulator) path.

    cost = pl.CostEstimate(
        flops=4 * B * L * E,
        transcendentals=B * L,
        bytes_accessed=itemsize * B * (L * E + E) + 4 * B * (L + E + 1),
    )

    scores, ctx = pl.pallas_call(
        _attention_kernel,
        grid=(B // TB,),
        in_specs=[
            pl.BlockSpec((TB, 1, E), lambda i: (i, 0, 0)),     # q
            pl.BlockSpec((TB, L, E), lambda i: (i, 0, 0)),     # enc_output (unpadded)
            pl.BlockSpec((TB, 1, 1), lambda i: (i, 0, 0)),     # lengths
        ],
        out_specs=[
            pl.BlockSpec((TB, 1, L), lambda i: (i, 0, 0)),     # scores
            pl.BlockSpec((TB, 1, E), lambda i: (i, 0, 0)),     # context
        ],
        out_shape=(
            jax.ShapeDtypeStruct((B, 1, L), jnp.float32),
            jax.ShapeDtypeStruct((B, 1, E), jnp.float32),
        ),
        compiler_params=pltpu.CompilerParams(
            dimension_semantics=("parallel",),
            vmem_limit_bytes=int(budget),
        ),
        cost_estimate=cost,
    )(q, enc_output, len3)

    return scores[:, 0, :], ctx[:, 0, :]


# ----------------------------------------------------------------------------
# LSTMCell (whole-array, lane-aligned per-gate weight slabs)
# ----------------------------------------------------------------------------
def _lstm_cell_kernel(x_ref, h_ref, c_ref, wih_ref, whh_ref, b_ref,
                      h_out_ref, c_out_ref):
    x = x_ref[...]          # (B, X)
    h = h_ref[...]          # (B, D)
    c = c_ref[...]          # (B, D)

    def gate(k):            # each gate born lane-aligned at offset 0
        return (jnp.dot(x, wih_ref[k], preferred_element_type=jnp.float32)
                + jnp.dot(h, whh_ref[k], preferred_element_type=jnp.float32)
                + b_ref[k])

    i_g = jax.nn.sigmoid(gate(0))
    f_g = jax.nn.sigmoid(gate(1))
    g_g = jnp.tanh(gate(2))
    o_g = jax.nn.sigmoid(gate(3))

    c_new = f_g * c + i_g * g_g
    h_new = o_g * jnp.tanh(c_new)
    h_out_ref[...] = h_new.astype(h_out_ref.dtype)
    c_out_ref[...] = c_new.astype(c_out_ref.dtype)


def lstm_cell(x, h, c, w_ih, w_hh, b_ih, b_hh, *, vmem_budget_bytes=None):
    B, D = h.shape
    X = x.shape[1]
    budget = vmem_budget_bytes if vmem_budget_bytes is not None else _vmem_budget_bytes()
    # Pre-split the stacked PyTorch gate weights (gate order i, f, g, o) into
    # per-gate slabs with the contraction dim leading.
    wih_g = jnp.transpose(w_ih.reshape(4, D, X), (0, 2, 1))   # (4, X, D)
    whh_g = jnp.transpose(w_hh.reshape(4, D, D), (0, 2, 1))   # (4, D, D)
    b_g = (b_ih + b_hh).reshape(4, 1, D)

    return pl.pallas_call(
        _lstm_cell_kernel,
        out_shape=(jax.ShapeDtypeStruct((B, D), jnp.float32),
                   jax.ShapeDtypeStruct((B, D), jnp.float32)),
        compiler_params=pltpu.CompilerParams(vmem_limit_bytes=int(budget)),
    )(x, h, c, wih_g, whh_g, b_g)


# ----------------------------------------------------------------------------
# Output Linear, tiled over the vocab dimension (w_out streams through VMEM)
# ----------------------------------------------------------------------------
def _out_linear_kernel(h_ref, w_ref, b_ref, out_ref):
    out_ref[...] = (
        jnp.dot(h_ref[...], w_ref[...], preferred_element_type=jnp.float32)
        + b_ref[...]
    ).astype(out_ref.dtype)


def output_linear(h, w_out, b_out, *, vmem_budget_bytes=None):
    B, D = h.shape
    V = w_out.shape[0]
    budget = vmem_budget_bytes if vmem_budget_bytes is not None else _vmem_budget_bytes()
    w_t = jnp.transpose(w_out)          # (D, V) -- contracted dim leading
    b = b_out.reshape(1, V)
    TV = _pick_vocab_tile(V, D, 4, int(budget * 0.6))

    return pl.pallas_call(
        _out_linear_kernel,
        grid=(V // TV,),
        in_specs=[
            pl.BlockSpec((B, D), lambda j: (0, 0)),
            pl.BlockSpec((D, TV), lambda j: (0, j)),
            pl.BlockSpec((1, TV), lambda j: (0, j)),
        ],
        out_specs=pl.BlockSpec((B, TV), lambda j: (0, j)),
        out_shape=jax.ShapeDtypeStruct((B, V), jnp.float32),
        compiler_params=pltpu.CompilerParams(
            dimension_semantics=("parallel",),
            vmem_limit_bytes=int(budget),
        ),
    )(h, w_t, b)


# ----------------------------------------------------------------------------
# MultiDecoder forward (Pallas)
# ----------------------------------------------------------------------------
def multi_decoder_forward(params, embedding_input, h1, c1, fusion,
                          one_hot_sentence, one_hot_sentence_len):
    obj = h1[:, None, :]   # see TODO(synk) at the top of the file

    _, vision_weighted = additive_attention(h1, fusion, obj, params["w_vis"], None)
    _, one_hot_weighted = additive_attention(h1, one_hot_sentence, obj,
                                             params["w_oh"], one_hot_sentence_len)

    rnn_input = jnp.concatenate(
        [embedding_input, vision_weighted, one_hot_weighted], axis=1)

    h_new, c_new = lstm_cell(
        rnn_input, h1, c1,
        params["w_ih"], params["w_hh"], params["b_ih"], params["b_hh"])
    logits = output_linear(h_new, params["w_out"], params["b_out"])
    return logits, h_new, c_new


# ----------------------------------------------------------------------------
# Pure-JAX references
# ----------------------------------------------------------------------------
def attention_reference(hidden, enc_output, obj_emb, weight, length=None):
    B, L, _ = enc_output.shape
    proj = jnp.einsum("ble,de->bld", enc_output.astype(jnp.float32), weight,
                      precision=jax.lax.Precision.HIGHEST)
    att_v = jnp.sum(hidden[:, None, :] * proj, axis=2)
    att_o = jnp.sum(obj_emb * proj, axis=2)
    att = RATIO * att_v + (1.0 - RATIO) * att_o
    if length is not None:
        pos = jnp.arange(L)[None, :]
        att = jnp.where(pos >= length[:, None], -jnp.inf, att)
    return jax.nn.softmax(att, axis=1)


def multi_decoder_reference(params, embedding_input, h1, c1, fusion,
                            one_hot_sentence, one_hot_sentence_len):
    HI = jax.lax.Precision.HIGHEST
    obj = h1[:, None, :]
    v_score = attention_reference(h1, fusion, obj, params["w_vis"], None)
    v_weighted = jnp.einsum("bl,ble->be", v_score, fusion, precision=HI)
    o_score = attention_reference(h1, one_hot_sentence, obj, params["w_oh"],
                                  one_hot_sentence_len)
    o_weighted = jnp.einsum("bl,ble->be", o_score, one_hot_sentence, precision=HI)
    rnn_input = jnp.concatenate([embedding_input, v_weighted, o_weighted], axis=1)

    D = h1.shape[1]
    gates = (jnp.dot(rnn_input, params["w_ih"].T, precision=HI) + params["b_ih"]
             + jnp.dot(h1, params["w_hh"].T, precision=HI) + params["b_hh"])
    i = jax.nn.sigmoid(gates[:, 0 * D:1 * D])
    f = jax.nn.sigmoid(gates[:, 1 * D:2 * D])
    g = jnp.tanh(gates[:, 2 * D:3 * D])
    o = jax.nn.sigmoid(gates[:, 3 * D:4 * D])
    c_new = f * c1 + i * g
    h_new = o * jnp.tanh(c_new)
    logits = jnp.dot(h_new, params["w_out"].T, precision=HI) + params["b_out"]
    return logits, h_new, c_new


# ----------------------------------------------------------------------------
if __name__ == "__main__":
    key = jax.random.PRNGKey(0)
    keys = jax.random.split(key, 16)

    B = 2
    EMBED = 16            # embed_dim
    VISION = 32           # vision_dim
    DEC = 32              # decoder_dim
    VOCAB = 50            # vocab_size
    L_VIS = 16            # visual regions
    L_SENT = 8            # one-hot sentence length (padded)
    ONE_HOT_DIM = 2 * EMBED

    def rnd(k, shape, scale=1.0):
        return scale * jax.random.normal(k, shape, dtype=jnp.float32)

    params = {
        "w_vis": rnd(keys[0], (DEC, VISION), 1.0 / math.sqrt(VISION)),
        "w_oh": rnd(keys[1], (DEC, ONE_HOT_DIM), 1.0 / math.sqrt(ONE_HOT_DIM)),
        "w_ih": rnd(keys[2], (4 * DEC, EMBED * 3 + VISION), 1.0 / math.sqrt(DEC)),
        "w_hh": rnd(keys[3], (4 * DEC, DEC), 1.0 / math.sqrt(DEC)),
        "b_ih": rnd(keys[4], (4 * DEC,), 1.0 / math.sqrt(DEC)),
        "b_hh": rnd(keys[5], (4 * DEC,), 1.0 / math.sqrt(DEC)),
        "w_out": rnd(keys[6], (VOCAB, DEC), 1.0 / math.sqrt(DEC)),
        "b_out": rnd(keys[7], (VOCAB,), 1.0 / math.sqrt(DEC)),
    }

    embedding_input = rnd(keys[8], (B, EMBED))
    h1 = rnd(keys[9], (B, DEC))
    c1 = rnd(keys[10], (B, DEC))
    fusion = rnd(keys[11], (B, L_VIS, VISION))
    one_hot_sentence = rnd(keys[12], (B, L_SENT, ONE_HOT_DIM))
    one_hot_sentence_len = jnp.array([L_SENT, L_SENT - 3], dtype=jnp.int32)

    # NOTE on tolerances: the hoisted q projection uses default matmul precision
    # (bf16 MXU passes) and the softmax uses the approximate EUP reciprocal, so
    # comparisons against the HIGHEST-precision reference are at ~1e-2 level.

    # ---- 1) standalone Attention kernel (with a distinct obj_emb) -----------
    obj_emb = rnd(keys[13], (B, 1, DEC))
    scores, ctx = additive_attention(h1, one_hot_sentence, obj_emb,
                                     params["w_oh"], one_hot_sentence_len)
    jax.block_until_ready(scores)
    scores_ref = attention_reference(h1, one_hot_sentence, obj_emb,
                                     params["w_oh"], one_hot_sentence_len)
    ctx_ref = jnp.einsum("bl,ble->be", scores_ref, one_hot_sentence,
                         precision=jax.lax.Precision.HIGHEST)
    assert scores.shape == (B, L_SENT)
    assert jnp.allclose(scores, scores_ref, atol=3e-2, rtol=3e-2), "scores mismatch"
    assert jnp.allclose(ctx, ctx_ref, atol=1e-1, rtol=5e-2), "context mismatch"

    # length=None path
    scores_nm, _ = additive_attention(h1, fusion, obj_emb, params["w_vis"], None)
    ref_nm = attention_reference(h1, fusion, obj_emb, params["w_vis"], None)
    assert jnp.allclose(scores_nm, ref_nm, atol=3e-2, rtol=3e-2), "no-mask mismatch"

    # zero-length rows stay finite (finite mask value instead of -inf)
    scores_z, ctx_z = additive_attention(
        h1, one_hot_sentence, obj_emb, params["w_oh"],
        jnp.array([0, L_SENT], dtype=jnp.int32))
    jax.block_until_ready(scores_z)
    assert bool(jnp.all(jnp.isfinite(scores_z))), "zero-length produced NaN/inf"
    assert bool(jnp.all(jnp.isfinite(ctx_z))), "zero-length ctx NaN/inf"

    # bf16 storage path: caller passes enc already in bf16, no pre-cast pass
    scores_bf, _ = additive_attention(h1, one_hot_sentence.astype(jnp.bfloat16),
                                      obj_emb, params["w_oh"],
                                      one_hot_sentence_len)
    jax.block_until_ready(scores_bf)
    assert jnp.allclose(scores_bf, scores_ref, atol=1e-1, rtol=0.0), "bf16 mismatch"

    # ---- 2) full MultiDecoder forward ----------------------------------------
    out = multi_decoder_forward(params, embedding_input, h1, c1, fusion,
                                one_hot_sentence, one_hot_sentence_len)
    logits, h_new, c_new = jax.block_until_ready(out)
    logits_ref, h_ref, c_ref = multi_decoder_reference(
        params, embedding_input, h1, c1, fusion,
        one_hot_sentence, one_hot_sentence_len)

    assert logits.shape == (B, VOCAB)
    assert h_new.shape == (B, DEC) and c_new.shape == (B, DEC)
    assert jnp.allclose(logits, logits_ref, atol=1e-1, rtol=5e-2), "logits mismatch"
    assert jnp.allclose(h_new, h_ref, atol=1e-1, rtol=5e-2), "h1 mismatch"
    assert jnp.allclose(c_new, c_ref, atol=1e-1, rtol=5e-2), "c1 mismatch"

    print("KERNEL_OK")
</pallas_src>

<mosaic_0001>
module attributes {stable_mosaic.version = 11 : i64} {
  func.func @_attention_kernel(%arg0: i32, %arg1: memref<1x1x32xf32, #tpu.memory_space<vmem>>, %arg2: memref<1x8x32xf32, #tpu.memory_space<vmem>>, %arg3: memref<1x1x1xi32, #tpu.memory_space<vmem>>, %arg4: memref<1x1x8xf32, #tpu.memory_space<vmem>>, %arg5: memref<1x1x32xf32, #tpu.memory_space<vmem>>) attributes {dimension_semantics = [#tpu.dimension_semantics<parallel>], iteration_bounds = array<i64: 2>, scalar_prefetch = 0 : i64, scratch_operands = 0 : i64, tpu.core_type = #tpu.core_type<tc>, window_params = [{transform_indices = @transform_0, window_bounds = array<i64: 1, 1, 32>}, {transform_indices = @transform_1, window_bounds = array<i64: 1, 8, 32>}, {transform_indices = @transform_2, window_bounds = array<i64: 1, 1, 1>}, {transform_indices = @transform_3, window_bounds = array<i64: 1, 1, 8>}, {transform_indices = @transform_4, window_bounds = array<i64: 1, 1, 32>}]} {
    %c0 = arith.constant 0 : index
    %c0_0 = arith.constant 0 : index
    %c0_1 = arith.constant 0 : index
    %0 = vector.load %arg1[%c0, %c0_0, %c0_1] : memref<1x1x32xf32, #tpu.memory_space<vmem>>, vector<1x1x32xf32>
    %c0_2 = arith.constant 0 : index
    %c0_3 = arith.constant 0 : index
    %c0_4 = arith.constant 0 : index
    %1 = vector.load %arg2[%c0_2, %c0_3, %c0_4] : memref<1x8x32xf32, #tpu.memory_space<vmem>>, vector<1x8x32xf32>
    "tpu.trace_start"() <{level = 10 : i32, message = "bqe,ble->bql"}> : () -> ()
    %cst = arith.constant dense<0.000000e+00> : vector<1x1x8xf32>
    %2 = tpu.matmul %0, %1, %cst {dimension_numbers = #tpu.dot_dimension_numbers<[2], [2], [1], [1], [0, 0, 0, 1, 1, 1], [0], [0]>} : vector<1x1x32xf32>, vector<1x8x32xf32>, vector<1x1x8xf32> -> vector<1x1x8xf32>
    "tpu.trace_stop"() : () -> ()
    %3 = tpu.iota {dimensions = array<i32: 2>} : vector<1x1x8xi32>
    %c0_5 = arith.constant 0 : index
    %c0_6 = arith.constant 0 : index
    %c0_7 = arith.constant 0 : index
    %4 = vector.load %arg3[%c0_5, %c0_6, %c0_7] : memref<1x1x1xi32, #tpu.memory_space<vmem>>, vector<1x1x1xi32>
    %5 = vector.broadcast %4 : vector<1x1x1xi32> to vector<1x1x8xi32>
    %6 = arith.cmpi slt, %3, %5 : vector<1x1x8xi32>
    %cst_8 = arith.constant -1.000000e+30 : f32
    %7 = vector.broadcast %cst_8 : f32 to vector<1x1x8xf32>
    %8 = arith.select %6, %2, %7 : vector<1x1x8xi1>, vector<1x1x8xf32>
    %cst_9 = arith.constant dense<0xFF800000> : vector<1x1xf32>
    %9 = vector.multi_reduction <maximumf>, %8, %cst_9 [2] : vector<1x1x8xf32> to vector<1x1xf32>
    %10 = vector.shape_cast %9 : vector<1x1xf32> to vector<1x1x1xf32>
    %11 = vector.broadcast %10 : vector<1x1x1xf32> to vector<1x1x8xf32>
    %12 = arith.subf %8, %11 : vector<1x1x8xf32>
    %13 = math.exp %12 : vector<1x1x8xf32>
    %cst_10 = arith.constant dense<0.000000e+00> : vector<1x1xf32>
    %14 = vector.multi_reduction <add>, %13, %cst_10 [2] : vector<1x1x8xf32> to vector<1x1xf32>
    %15 = vector.shape_cast %14 : vector<1x1xf32> to vector<1x1x1xf32>
    %16 = tpu.reciprocal %15 {approx = true} : vector<1x1x1xf32> -> vector<1x1x1xf32>
    %17 = vector.broadcast %16 : vector<1x1x1xf32> to vector<1x1x8xf32>
    %18 = arith.mulf %13, %17 : vector<1x1x8xf32>
    %c0_11 = arith.constant 0 : index
    %c0_12 = arith.constant 0 : index
    %c0_13 = arith.constant 0 : index
    %19 = vector.load %arg4[%c0_11, %c0_12, %c0_13] : memref<1x1x8xf32, #tpu.memory_space<vmem>>, vector<1x1x8xf32>
    tpu.vector_store %arg4[%c0_11, %c0_12, %c0_13], %18 {strides = array<i32>} : memref<1x1x8xf32, #tpu.memory_space<vmem>>, vector<1x1x8xf32>,
    "tpu.trace_start"() <{level = 10 : i32, message = "bql,ble->bqe"}> : () -> ()
    %cst_14 = arith.constant dense<0.000000e+00> : vector<1x1x32xf32>
    %20 = tpu.matmul %18, %1, %cst_14 {dimension_numbers = #tpu.dot_dimension_numbers<[2], [1], [1], [2], [0, 0, 0, 1, 1, 2], [0], [0]>} : vector<1x1x8xf32>, vector<1x8x32xf32>, vector<1x1x32xf32> -> vector<1x1x32xf32>
    "tpu.trace_stop"() : () -> ()
    %c0_15 = arith.constant 0 : index
    %c0_16 = arith.constant 0 : index
    %c0_17 = arith.constant 0 : index
    %21 = vector.load %arg5[%c0_15, %c0_16, %c0_17] : memref<1x1x32xf32, #tpu.memory_space<vmem>>, vector<1x1x32xf32>
    tpu.vector_store %arg5[%c0_15, %c0_16, %c0_17], %20 {strides = array<i32>} : memref<1x1x32xf32, #tpu.memory_space<vmem>>, vector<1x1x32xf32>,
    return
  }
  func.func @transform_0(%arg0: i32) -> (i32, i32, i32) {
    %c0_i32 = arith.constant 0 : i32
    %c0_i32_0 = arith.constant 0 : i32
    %c0_i32_1 = arith.constant 0 : i32
    return %arg0, %c0_i32, %c0_i32_0 : i32, i32, i32
  }
  func.func @transform_1(%arg0: i32) -> (i32, i32, i32) {
    %c0_i32 = arith.constant 0 : i32
    %c0_i32_0 = arith.constant 0 : i32
    %c0_i32_1 = arith.constant 0 : i32
    return %arg0, %c0_i32, %c0_i32_0 : i32, i32, i32
  }
  func.func @transform_2(%arg0: i32) -> (i32, i32, i32) {
    %c0_i32 = arith.constant 0 : i32
    %c0_i32_0 = arith.constant 0 : i32
    %c0_i32_1 = arith.constant 0 : i32
    return %arg0, %c0_i32, %c0_i32_0 : i32, i32, i32
  }
  func.func @transform_3(%arg0: i32) -> (i32, i32, i32) {
    %c0_i32 = arith.constant 0 : i32
    %c0_i32_0 = arith.constant 0 : i32
    %c0_i32_1 = arith.constant 0 : i32
    return %arg0, %c0_i32, %c0_i32_0 : i32, i32, i32
  }
  func.func @transform_4(%arg0: i32) -> (i32, i32, i32) {
    %c0_i32 = arith.constant 0 : i32
    %c0_i32_0 = arith.constant 0 : i32
    %c0_i32_1 = arith.constant 0 : i32
    return %arg0, %c0_i32, %c0_i32_0 : i32, i32, i32
  }
}

</mosaic_0001>

<llo_original>
// kernel: tpu_custom_call.1
$region0: #{tpu_custom_call.1}
  #allocation0 [shape = 'u32[]', space=smem, size = 0x4, offset = 0x4, fixed_abs, tag = 'smem constant byte address 0x4 - core index']
  #allocation1 [shape = 'u32[144,128]{1,0:T(1,128)}', space=vmem, size = 0x12000, scoped, tag = 'internal scratch']
  %s0 = inlined_call_operand.vmem [shape: f32[2,1,32], index: 0, kind: input, shape index: {}]
  %s1 = inlined_call_operand.hbm [shape: f32[2,8,32], index: 1, kind: input, shape index: {}]
  %s2 = inlined_call_operand.vmem [shape: s32[2,1,1], index: 2, kind: input, shape index: {}]
  %s3 = inlined_call_operand.hbm [shape: f32[2,1,8], index: 3, kind: output, shape index: {0}]
  %s4 = inlined_call_operand.hbm [shape: f32[2,1,32], index: 4, kind: output, shape index: {1}]
  %5 = xla_tuple %s3, %s4
  %s6 = sld [smem:[#allocation0]]
  $region57: #{tpu_custom_call.1} parent=0
    _
  %s8 = ssub.s32 1, %s6
  %s9 = scalar_select 0, %s8, %s6
  $region1: #{tpu_custom_call.1} parent=0
    #allocation2 [shape = 'u8[8192]{0}', space=vmem, size = 0x2000, scoped, tag = 'input window, operand 1']
    #allocation3 [shape = 's32[2]{0}', space=sflag, size = 0x8, scoped, tag = 'scoped memory for tpu_custom_call.1']
    #allocation4 [shape = 's32[2]{0}', space=sflag, size = 0x8, scoped, tag = 'scoped memory for tpu_custom_call.1']
    #allocation5 [shape = 'u8[1024]{0}', space=vmem, size = 0x400, scoped, tag = 'output window, operand 0']
    #allocation6 [shape = 'u8[1024]{0}', space=vmem, size = 0x400, scoped, tag = 'output window, operand 1']
    #allocation7 [shape = 's32[2]{0}', space=sflag, size = 0x8, scoped, tag = 'scoped memory for tpu_custom_call.1']
    %10 = vsyncpa [#allocation3], 0
    %s11 = scalar_lea.sflag [#allocation3], 1
    %12 = vsyncpa %s11, 0
    %13 = vsyncpa [#allocation4], 0
    %s14 = scalar_lea.sflag [#allocation4], 1
    %15 = vsyncpa %s14, 0
    %16 = vsyncpa [#allocation7], 0
    %s17 = scalar_lea.sflag [#allocation7], 1
    %18 = vsyncpa %s17, 0
    loop: start=0, step=1, limit=4
    $region2: #{tpu_custom_call.1} parent=1 // loop_pre_header
      _
    $region3: #{tpu_custom_call.1} parent=1 // loop_header
      %s20 = sphi 0, %s24
      %p21 = scmp.ge.s32.totalorder %s20, 4
      %s30 = sphi 0, %s32
      %s33 = sphi 0, %s30
      %s34 = sphi 0, %s33
      %s50 = sphi 0, %s34
      %s56 = sphi 0, %s58
      %s59 = sphi 0, %s56
      %s60 = sphi 0, %s59
      %s76 = sphi 0, %s60
      %s82 = sphi 0, %s84
      %s85 = sphi 0, %s82
      %s86 = sphi 0, %s85
      %s102 = sphi 0, %s86
      %s108 = sphi 0, %s110
      %s111 = sphi 0, %s108
      %s112 = sphi 0, %s111
      %s128 = sphi 0, %s112
      %s134 = sphi 0, %s136
      %s137 = sphi 0, %s134
      %s138 = sphi 0, %s137
      %s154 = sphi 0, %s138
    $region4: #{tpu_custom_call.1} parent=1 // loop_header_branch
      %23 = sbr.rel (%p21) target = $region8
    $region5: #{tpu_custom_call.1} parent=1 // loop_body
      %s25 = ssub.s32 %s20, 1
      %s26 = ssub.s32 %s20, 2
      %s27 = sadd.s32 %s20, 1
      %s28 = ssub.s32 %s20, %s27
      %p29 = scmp.eq.s32.totalorder %s28, 0
      %s31 = sadd.s32 %s30, 1
      %s32 = scalar_select %p29, %s30, %s31
      %p35 = pneg %p29
      %p36 = scmp.eq.s32.totalorder %s20, 1
      %p37 = por %p35, %p36
      %p38 = scmp.ne.s32.totalorder %s30, %s33
      %p39 = scmp.eq.s32.totalorder %s20, 0
      %p40 = por %p38, %p39
      %p41 = scmp.ne.s32.totalorder %s30, %s33
      %p42 = scmp.eq.s32.totalorder %s25, 1
      %p43 = por %p41, %p42
      %p44 = scmp.ne.s32.totalorder %s33, %s34
      %p45 = scmp.eq.s32.totalorder %s25, 0
      %p46 = por %p44, %p45
      %p47 = scmp.ne.s32.totalorder %s33, %s34
      %p48 = scmp.eq.s32.totalorder %s26, 1
      %p49 = por %p47, %p48
      %p51 = scmp.ne.s32.totalorder %s34, %s50
      %p52 = scmp.eq.s32.totalorder %s26, 0
      %p53 = por %p51, %p52
      %s54 = ssub.s32 %s20, %s27
      %p55 = scmp.eq.s32.totalorder %s54, 0
      %s57 = sadd.s32 %s56, 1
      %s58 = scalar_select %p55, %s56, %s57
      %p61 = pneg %p55
      %p62 = scmp.eq.s32.totalorder %s20, 1
      %p63 = por %p61, %p62
      %p64 = scmp.ne.s32.totalorder %s56, %s59
      %p65 = scmp.eq.s32.totalorder %s20, 0
      %p66 = por %p64, %p65
      %p67 = scmp.ne.s32.totalorder %s56, %s59
      %p68 = scmp.eq.s32.totalorder %s25, 1
      %p69 = por %p67, %p68
      %p70 = scmp.ne.s32.totalorder %s59, %s60
      %p71 = scmp.eq.s32.totalorder %s25, 0
      %p72 = por %p70, %p71
      %p73 = scmp.ne.s32.totalorder %s59, %s60
      %p74 = scmp.eq.s32.totalorder %s26, 1
      %p75 = por %p73, %p74
      %p77 = scmp.ne.s32.totalorder %s60, %s76
      %p78 = scmp.eq.s32.totalorder %s26, 0
      %p79 = por %p77, %p78
      %s80 = ssub.s32 %s20, %s27
      %p81 = scmp.eq.s32.totalorder %s80, 0
      %s83 = sadd.s32 %s82, 1
      %s84 = scalar_select %p81, %s82, %s83
      %p87 = pneg %p81
      %p88 = scmp.eq.s32.totalorder %s20, 1
      %p89 = por %p87, %p88
      %p90 = scmp.ne.s32.totalorder %s82, %s85
      %p91 = scmp.eq.s32.totalorder %s20, 0
      %p92 = por %p90, %p91
      %p93 = scmp.ne.s32.totalorder %s82, %s85
      %p94 = scmp.eq.s32.totalorder %s25, 1
      %p95 = por %p93, %p94
      %p96 = scmp.ne.s32.totalorder %s85, %s86
      %p97 = scmp.eq.s32.totalorder %s25, 0
      %p98 = por %p96, %p97
      %p99 = scmp.ne.s32.totalorder %s85, %s86
      %p100 = scmp.eq.s32.totalorder %s26, 1
      %p101 = por %p99, %p100
      %p103 = scmp.ne.s32.totalorder %s86, %s102
      %p104 = scmp.eq.s32.totalorder %s26, 0
      %p105 = por %p103, %p104
      %s106 = ssub.s32 %s20, %s27
      %p107 = scmp.eq.s32.totalorder %s106, 0
      %s109 = sadd.s32 %s108, 1
      %s110 = scalar_select %p107, %s108, %s109
      %p113 = pneg %p107
      %p114 = scmp.eq.s32.totalorder %s20, 1
      %p115 = por %p113, %p114
      %p116 = scmp.ne.s32.totalorder %s108, %s111
      %p117 = scmp.eq.s32.totalorder %s20, 0
      %p118 = por %p116, %p117
      %p119 = scmp.ne.s32.totalorder %s108, %s111
      %p120 = scmp.eq.s32.totalorder %s25, 1
      %p121 = por %p119, %p120
      %p122 = scmp.ne.s32.totalorder %s111, %s112
      %p123 = scmp.eq.s32.totalorder %s25, 0
      %p124 = por %p122, %p123
      %p125 = scmp.ne.s32.totalorder %s111, %s112
      %p126 = scmp.eq.s32.totalorder %s26, 1
      %p127 = por %p125, %p126
      %p129 = scmp.ne.s32.totalorder %s112, %s128
      %p130 = scmp.eq.s32.totalorder %s26, 0
      %p131 = por %p129, %p130
      %s132 = ssub.s32 %s20, %s27
      %p133 = scmp.eq.s32.totalorder %s132, 0
      %s135 = sadd.s32 %s134, 1
      %s136 = scalar_select %p133, %s134, %s135
      %p139 = pneg %p133
      %p140 = scmp.eq.s32.totalorder %s20, 1
      %p141 = por %p139, %p140
      %p142 = scmp.ne.s32.totalorder %s134, %s137
      %p143 = scmp.eq.s32.totalorder %s20, 0
      %p144 = por %p142, %p143
      %p145 = scmp.ne.s32.totalorder %s134, %s137
      %p146 = scmp.eq.s32.totalorder %s25, 1
      %p147 = por %p145, %p146
      %p148 = scmp.ne.s32.totalorder %s137, %s138
      %p149 = scmp.eq.s32.totalorder %s25, 0
      %p150 = por %p148, %p149
      %p151 = scmp.ne.s32.totalorder %s137, %s138
      %p152 = scmp.eq.s32.totalorder %s26, 1
      %p153 = por %p151, %p152
      %p155 = scmp.ne.s32.totalorder %s138, %s154
      %p156 = scmp.eq.s32.totalorder %s26, 0
      %p157 = por %p155, %p156
      %p158 = scmp.le.s32.totalorder 1, %s20
      %p159 = scmp.lt.s32.totalorder %s20, 3
      %p160 = pnand %p158, %p159
      %p161 = pneg %p160
      // Predicated region
      $region9: #{tpu_custom_call.1} parent=5 // pred_check
        _
      $region10: #{tpu_custom_call.1} parent=5 // pred_check_branch
        %163 = sbr.rel (%p160) target = $region12
      $region11: #{tpu_custom_call.1} parent=5 // pred_region
        %s164 = ssub.s32 %s20, 1
      $region12: #{tpu_custom_call.1} parent=5 // pred_fallthru
        _
      %p165 = scmp.lt.s32.totalorder %s20, 2
      // Predicated region
      $region13: #{tpu_custom_call.1} parent=5 // pred_check
        %p166 = pneg %p165
      $region14: #{tpu_custom_call.1} parent=5 // pred_check_branch
        %168 = sbr.rel (%p166) target = $region16
      $region15: #{tpu_custom_call.1} parent=5 // pred_region
        // Predicated region
        $region17: #{tpu_custom_call.1} parent=15 // pred_check
          %p169 = pneg %p40
        $region18: #{tpu_custom_call.1} parent=15 // pred_check_branch
          %171 = sbr.rel (%p169) target = $region20
        $region19: #{tpu_custom_call.1} parent=15 // pred_region
          %p172 = scmp.lt.s32.totalorder %s20, 1
          %s173 = scalar_select %p172, %s20, 1
          %s174 = scalar_lea.vmem %s0, %s173
        $region20: #{tpu_custom_call.1} parent=15 // pred_fallthru
          _
        // Predicated region
        $region21: #{tpu_custom_call.1} parent=15 // pred_check
          %p175 = pneg %p66
        $region22: #{tpu_custom_call.1} parent=15 // pred_check_branch
          %177 = sbr.rel (%p175) target = $region24
        $region23: #{tpu_custom_call.1} parent=15 // pred_region
          %s178 = sand.u32 %s56, 1
          %s179 = scalar_lea.sflag [#allocation3], %s178
          %s180 = sand.u32 %s56, 1
          %s181 = smul.addr %s180, 8
          %s182 = scalar_lea.vmem [#allocation2], %s181
          %s184 = ssub.s32 128, 128
          %185 = vsyncadd %s179, %s184
          %s186 = smul.addr %s20, 128
          %s187 = scalar_lea.hbm %s1, %s186
          %s189 = sshll.u32 %s182, 4
          %s190 = int_to_ptr.vmem [resolvable:$true] %s189
          %192 = dma.hbm_to_vmem [thread:$0]  %s187, 128, %s190, %s179
        $region24: #{tpu_custom_call.1} parent=15 // pred_fallthru
          _
        // Predicated region
        $region25: #{tpu_custom_call.1} parent=15 // pred_check
          %p193 = pneg %p92
        $region26: #{tpu_custom_call.1} parent=15 // pred_check_branch
          %195 = sbr.rel (%p193) target = $region28
        $region27: #{tpu_custom_call.1} parent=15 // pred_region
          %p196 = scmp.lt.s32.totalorder %s20, 1
          %s197 = scalar_select %p196, %s20, 1
          %s198 = scalar_lea.vmem %s2, %s197
        $region28: #{tpu_custom_call.1} parent=15 // pred_fallthru
          _
      $region16: #{tpu_custom_call.1} parent=5 // pred_fallthru
        _
      %p199 = scmp.le.s32.totalorder 1, %s20
      %p200 = scmp.lt.s32.totalorder %s20, 3
      %p201 = pnand %p199, %p200
      %p202 = pneg %p201
      // Predicated region
      $region29: #{tpu_custom_call.1} parent=5 // pred_check
        _
      $region30: #{tpu_custom_call.1} parent=5 // pred_check_branch
        %204 = sbr.rel (%p201) target = $region32
      $region31: #{tpu_custom_call.1} parent=5 // pred_region
        %s205 = ssub.s32 %s20, 1
        %s206 = sand.u32 %s59, 1
        %s207 = scalar_lea.sflag [#allocation3], %s206
        %s208 = sand.u32 %s59, 1
        %s209 = smul.addr %s208, 8
        %s210 = scalar_lea.vmem [#allocation2], %s209
        // Predicated region
        $region33: #{tpu_custom_call.1} parent=31 // pred_check
          %p211 = pneg %p72
        $region34: #{tpu_custom_call.1} parent=31 // pred_check_branch
          %213 = sbr.rel (%p211) target = $region36
        $region35: #{tpu_custom_call.1} parent=31 // pred_region
          %214 = dma.done %s207, 128
        $region36: #{tpu_custom_call.1} parent=31 // pred_fallthru
          _
        %p215 = scmp.lt.s32.totalorder %s25, 1
        %s216 = scalar_select %p215, %s25, 1
        %s217 = scalar_lea.vmem %s0, %s216
        %p218 = pneg %p46
        %p219 = pneg %p43
        %s220 = sand.u32 %s59, 1
        %s221 = scalar_lea.sflag [#allocation3], %s220
        %s222 = sand.u32 %s59, 1
        %s223 = smul.addr %s222, 8
        %s224 = scalar_lea.vmem [#allocation2], %s223
        %p225 = pneg %p72
        %p226 = pneg %p69
        %p227 = scmp.lt.s32.totalorder %s25, 1
        %s228 = scalar_select %p227, %s25, 1
        %s229 = scalar_lea.vmem %s2, %s228
        %p230 = pneg %p98
        %p231 = pneg %p95
        %p232 = pneg %p124
        %p233 = pneg %p121
        %s234 = sand.u32 %s111, 1
        %s235 = scalar_lea.sflag [#allocation4], %s234
        %s236 = sand.u32 %s111, 1
        %s237 = scalar_lea.vmem [#allocation5], %s236
        %p238 = pneg %p150
        %p239 = pneg %p147
        %s240 = sand.u32 %s137, 1
        %s241 = scalar_lea.sflag [#allocation7], %s240
        %s242 = sand.u32 %s137, 1
        %s243 = scalar_lea.vmem [#allocation6], %s242
        %p244 = scmp.lt.s32.totalorder %s25, 1
        %s245 = scalar_select %p244, %s25, 1
        %s246 = scalar_lea.vmem %s0, %s245
        %p247 = scmp.lt.s32.totalorder %s25, 1
        %s248 = scalar_select %p247, %s25, 1
        %s249 = scalar_lea.vmem %s2, %s248
        %v250 = vld [vmem:[%s246] sm:$0x1]
        %v251 = vld [vmem:[%s210] sm:$0xff]
        %vm252 = vcmask 261120
        %v254 = vsel %vm252, %v250, 0
        %v257 = vsel %vm252, %v251, 0
        %259 = vmatprep.subr.mxu0 0.0
        %260 = vmatpush1.xpose.msra.mxu0 %v257
        %261 = vmatprep.subr.mxu0 0.0
        %262 = vmatpush1.xpose.msra.mxu0 0.0
        %263 = vmatprep.subr.mxu0 0.0
        %264 = vmatpush1.xpose.msra.mxu0 0.0
        %265 = vmatprep.subr.mxu0 0.0
        %266 = vmatpush1.xpose.msra.mxu0 0.0
        %267 = vmatprep.subr.mxu0 0.0
        %268 = vmatpush1.xpose.msra.mxu0 0.0
        %269 = vmatprep.subr.mxu0 0.0
        %270 = vmatpush1.xpose.msra.mxu0 0.0
        %271 = vmatprep.subr.mxu0 0.0
        %272 = vmatpush1.xpose.msra.mxu0 0.0
        %273 = vmatprep.subr.mxu0 0.0
        %274 = vmatpush1.xpose.msra.mxu0 0.0
        %275 = vmatprep.subr.mxu0 0.0
        %276 = vmatpush1.xpose.msra.mxu0 0.0
        %277 = vmatprep.subr.mxu0 0.0
        %278 = vmatpush1.xpose.msra.mxu0 0.0
        %279 = vmatprep.subr.mxu0 0.0
        %280 = vmatpush1.xpose.msra.mxu0 0.0
        %281 = vmatprep.subr.mxu0 0.0
        %282 = vmatpush1.xpose.msra.mxu0 0.0
        %283 = vmatprep.subr.mxu0 0.0
        %284 = vmatpush1.xpose.msra.mxu0 0.0
        %285 = vmatprep.subr.mxu0 0.0
        %286 = vmatpush1.xpose.msra.mxu0 0.0
        %287 = vmatprep.subr.mxu0 0.0
        %288 = vmatpush1.xpose.msra.mxu0 0.0
        %289 = vmatprep.subr.mxu0 0.0
        %290 = vmatpush1.xpose.msra.mxu0 0.0
        %291 = vmatprep.subr.mxu0 0.0
        %292 = vmatpush1.xpose.msra.mxu0 0.0
        %293 = vmatprep.subr.mxu0 0.0
        %294 = vmatpush1.xpose.msra.mxu0 0.0
        %295 = vmatprep.subr.mxu0 0.0
        %296 = vmatpush1.xpose.msra.mxu0 0.0
        %297 = vmatprep.subr.mxu0 0.0
        %298 = vmatpush1.xpose.msra.mxu0 0.0
        %299 = vmatprep.subr.mxu0 0.0
        %300 = vmatpush1.xpose.msra.mxu0 0.0
        %301 = vmatprep.subr.mxu0 0.0
        %302 = vmatpush1.xpose.msra.mxu0 0.0
        %303 = vmatprep.subr.mxu0 0.0
        %304 = vmatpush1.xpose.msra.mxu0 0.0
        %305 = vmatprep.subr.mxu0 0.0
        %306 = vmatpush1.xpose.msra.mxu0 0.0
        %307 = vmatprep.subr.mxu0 0.0
        %308 = vmatpush1.xpose.msra.mxu0 0.0
        %309 = vmatprep.subr.mxu0 0.0
        %310 = vmatpush1.xpose.msra.mxu0 0.0
        %311 = vmatprep.subr.mxu0 0.0
        %312 = vmatpush1.xpose.msra.mxu0 0.0
        %313 = vmatprep.subr.mxu0 0.0
        %314 = vmatpush1.xpose.msra.mxu0 0.0
        %315 = vmatprep.subr.mxu0 0.0
        %316 = vmatpush1.xpose.msra.mxu0 0.0
        %317 = vmatprep.subr.mxu0 0.0
        %318 = vmatpush1.xpose.msra.mxu0 0.0
        %319 = vmatprep.subr.mxu0 0.0
        %320 = vmatpush1.xpose.msra.mxu0 0.0
        %321 = vmatprep.subr.mxu0 0.0
        %322 = vmatpush1.xpose.msra.mxu0 0.0
        %323 = vmatprep.mubr.f32.mxu0 0.0
        %324 = vmatmul.mubr.f32.gmra.mrb[0].mxu0 %v254
        %v325 = vpop.f32.mrb[0].mxu0
        %v326 = vadd.f32 0.0, %v325
        %v327 = vpop.f32.mrb[0].mxu0
        %328 = vdwg.mxu0
        %v329 = vlaneseq
        %v330 = vand.u32 %v329, 127
        %v331 = vld [vmem:[%s249] sm:$0x1]
        %332 = vset.pattern.permute.xlu0 0
        %333 = vperm.xlu0 %332, %v331
        %v334 = vpop.permute.xlu0 %333
        %v335 = vlaneseq
        %v336 = vshrl.u32 %v335, 7
        %v337 = vsub.s32 0, %v336
        %v338 = vrot.slane %v334, %v337
        %vm339 = vcmp.lt.s32.totalorder %v330, %v338
        %v340 = vsel %vm339, %v326, -1e+30
        %vm341 = vcmask 57344
        %v342 = vsel %vm341, %v340, -inf
        %343 = vmax.xlane.f32.xlu0 %v342
        %v344 = vpop.xlane.xlu0 %343
        %v345 = vsub.f32 %v340, %v344
        %v346 = vmul.f32 %v345, 1.442695
        %v347 = vpow.pop %v346
        %v348 = vsel %vm341, %v347, 0.0
        %349 = vadd.xlane.f32.xlu0 %v348
        %v350 = vpop.xlane.xlu0 %349
        %v351 = vrcp.pop %v350
        %v352 = vmul.f32 %v347, %v351
        %353 = vst.msk [vmem:[%s237] sm:$0x1] %vm341, %v352
        %vm354 = vcmask 64512
        %v356 = vsel %vm354, %v352, 0
        %358 = vmatprep.subr.mxu0 0.0
        %359 = vmatpush1.msra.mxu0 %v251
        %360 = vmatprep.subr.mxu0 0.0
        %361 = vmatpush1.msra.mxu0 0.0
        %362 = vmatprep.subr.mxu0 0.0
        %363 = vmatpush1.msra.mxu0 0.0
        %364 = vmatprep.subr.mxu0 0.0
        %365 = vmatpush1.msra.mxu0 0.0
        %366 = vmatprep.subr.mxu0 0.0
        %367 = vmatpush1.msra.mxu0 0.0
        %368 = vmatprep.subr.mxu0 0.0
        %369 = vmatpush1.msra.mxu0 0.0
        %370 = vmatprep.subr.mxu0 0.0
        %371 = vmatpush1.msra.mxu0 0.0
        %372 = vmatprep.subr.mxu0 0.0
        %373 = vmatpush1.msra.mxu0 0.0
        %374 = vmatprep.subr.mxu0 0.0
        %375 = vmatpush1.msra.mxu0 0.0
        %376 = vmatprep.subr.mxu0 0.0
        %377 = vmatpush1.msra.mxu0 0.0
        %378 = vmatprep.subr.mxu0 0.0
        %379 = vmatpush1.msra.mxu0 0.0
        %380 = vmatprep.subr.mxu0 0.0
        %381 = vmatpush1.msra.mxu0 0.0
        %382 = vmatprep.subr.mxu0 0.0
        %383 = vmatpush1.msra.mxu0 0.0
        %384 = vmatprep.subr.mxu0 0.0
        %385 = vmatpush1.msra.mxu0 0.0
        %386 = vmatprep.subr.mxu0 0.0
        %387 = vmatpush1.msra.mxu0 0.0
        %388 = vmatprep.subr.mxu0 0.0
        %389 = vmatpush1.msra.mxu0 0.0
        %390 = vmatprep.subr.mxu0 0.0
        %391 = vmatpush1.msra.mxu0 0.0
        %392 = vmatprep.subr.mxu0 0.0
        %393 = vmatpush1.msra.mxu0 0.0
        %394 = vmatprep.subr.mxu0 0.0
        %395 = vmatpush1.msra.mxu0 0.0
        %396 = vmatprep.subr.mxu0 0.0
        %397 = vmatpush1.msra.mxu0 0.0
        %398 = vmatprep.subr.mxu0 0.0
        %399 = vmatpush1.msra.mxu0 0.0
        %400 = vmatprep.subr.mxu0 0.0
        %401 = vmatpush1.msra.mxu0 0.0
        %402 = vmatprep.subr.mxu0 0.0
        %403 = vmatpush1.msra.mxu0 0.0
        %404 = vmatprep.subr.mxu0 0.0
        %405 = vmatpush1.msra.mxu0 0.0
        %406 = vmatprep.subr.mxu0 0.0
        %407 = vmatpush1.msra.mxu0 0.0
        %408 = vmatprep.subr.mxu0 0.0
        %409 = vmatpush1.msra.mxu0 0.0
        %410 = vmatprep.subr.mxu0 0.0
        %411 = vmatpush1.msra.mxu0 0.0
        %412 = vmatprep.subr.mxu0 0.0
        %413 = vmatpush1.msra.mxu0 0.0
        %414 = vmatprep.subr.mxu0 0.0
        %415 = vmatpush1.msra.mxu0 0.0
        %416 = vmatprep.subr.mxu0 0.0
        %417 = vmatpush1.msra.mxu0 0.0
        %418 = vmatprep.subr.mxu0 0.0
        %419 = vmatpush1.msra.mxu0 0.0
        %420 = vmatprep.subr.mxu0 0.0
        %421 = vmatpush1.msra.mxu0 0.0
        %422 = vmatprep.mubr.f32.mxu0 0.0
        %423 = vmatmul.mubr.f32.gmra.mrb[0].mxu0 %v356
        %v424 = vpop.f32.mrb[0].mxu0
        %v425 = vadd.f32 0.0, %v424
        %v426 = vpop.f32.mrb[0].mxu0
        %427 = vdwg.mxu0
        %vm428 = vcmask 253952
        %429 = vst.msk [vmem:[%s243] sm:$0x1] %vm428, %v425
        %s430 = sand.u32 %s111, 1
        %s431 = scalar_lea.sflag [#allocation4], %s430
        %s432 = sand.u32 %s111, 1
        %s433 = scalar_lea.vmem [#allocation5], %s432
        %s434 = sand.u32 %s137, 1
        %s435 = scalar_lea.sflag [#allocation7], %s434
        %s436 = sand.u32 %s137, 1
        %s437 = scalar_lea.vmem [#allocation6], %s436
        // Predicated region
        $region37: #{tpu_custom_call.1} parent=31 // pred_check
          %p438 = pneg %p121
        $region38: #{tpu_custom_call.1} parent=31 // pred_check_branch
          %440 = sbr.rel (%p438) target = $region40
        $region39: #{tpu_custom_call.1} parent=31 // pred_region
          %s442 = ssub.s32 16, 16
          %443 = vsyncadd %s431, %s442
          %s444 = smul.addr %s25, 16
          %s445 = scalar_lea.hbm %s3, %s444
          %s447 = sshll.u32 %s433, 4
          %s448 = int_to_ptr.vmem [resolvable:$true] %s447
          %450 = dma.vmem_to_hbm [thread:$0]  %s448, 16, %s445, %s431
        $region40: #{tpu_custom_call.1} parent=31 // pred_fallthru
          _
        // Predicated region
        $region41: #{tpu_custom_call.1} parent=31 // pred_check
          %p451 = pneg %p147
        $region42: #{tpu_custom_call.1} parent=31 // pred_check_branch
          %453 = sbr.rel (%p451) target = $region44
        $region43: #{tpu_custom_call.1} parent=31 // pred_region
          %s455 = ssub.s32 16, 16
          %456 = vsyncadd %s435, %s455
          %s457 = smul.addr %s25, 16
          %s458 = scalar_lea.hbm %s4, %s457
          %s460 = sshll.u32 %s437, 4
          %s461 = int_to_ptr.vmem [resolvable:$true] %s460
          %463 = dma.vmem_to_hbm [thread:$0]  %s461, 16, %s458, %s435
        $region44: #{tpu_custom_call.1} parent=31 // pred_fallthru
          _
      $region32: #{tpu_custom_call.1} parent=5 // pred_fallthru
        _
      %p464 = scmp.le.s32.totalorder 2, %s20
      // Predicated region
      $region45: #{tpu_custom_call.1} parent=5 // pred_check
        %p465 = pneg %p464
      $region46: #{tpu_custom_call.1} parent=5 // pred_check_branch
        %467 = sbr.rel (%p465) target = $region48
      $region47: #{tpu_custom_call.1} parent=5 // pred_region
        %s468 = ssub.s32 %s20, 2
        // Predicated region
        $region49: #{tpu_custom_call.1} parent=47 // pred_check
          %p469 = pneg %p127
        $region50: #{tpu_custom_call.1} parent=47 // pred_check_branch
          %471 = sbr.rel (%p469) target = $region52
        $region51: #{tpu_custom_call.1} parent=47 // pred_region
          %s472 = sand.u32 %s112, 1
          %s473 = scalar_lea.sflag [#allocation4], %s472
          %s474 = sand.u32 %s112, 1
          %s475 = scalar_lea.vmem [#allocation5], %s474
          %476 = dma.done %s473, 16
        $region52: #{tpu_custom_call.1} parent=47 // pred_fallthru
          _
        // Predicated region
        $region53: #{tpu_custom_call.1} parent=47 // pred_check
          %p477 = pneg %p153
        $region54: #{tpu_custom_call.1} parent=47 // pred_check_branch
          %479 = sbr.rel (%p477) target = $region56
        $region55: #{tpu_custom_call.1} parent=47 // pred_region
          %s480 = sand.u32 %s138, 1
          %s481 = scalar_lea.sflag [#allocation7], %s480
          %s482 = sand.u32 %s138, 1
          %s483 = scalar_lea.vmem [#allocation6], %s482
          %484 = dma.done %s481, 16
        $region56: #{tpu_custom_call.1} parent=47 // pred_fallthru
          _
      $region48: #{tpu_custom_call.1} parent=5 // pred_fallthru
        _
    $region6: #{tpu_custom_call.1} parent=1 // loop_footer
      %s24 = sadd.s32 1, %s20
    $region7: #{tpu_custom_call.1} parent=1 // loop_footer_branch
      %19 = sbr.rel target = $region3
    $region8: #{tpu_custom_call.1} parent=1 // loop_exit
      _
    %485 = vsyncpa [#allocation3], 1
    %s486 = scalar_lea.sflag [#allocation3], 1
    %487 = vsyncpa %s486, 1
    %488 = vsyncpa [#allocation4], 1
    %s489 = scalar_lea.sflag [#allocation4], 1
    %490 = vsyncpa %s489, 1
    %491 = vsyncpa [#allocation7], 1
    %s492 = scalar_lea.sflag [#allocation7], 1
    %493 = vsyncpa %s492, 1

</llo_original>
